<compile_context>
chip_gen: v5e
topology: v5e:2x2
jax: 0.10.0
libtpu: 0.0.40
codegen_flags: <defaults>
</compile_context>

<pallas_src>
import jax
import jax.numpy as jnp
from jax.experimental import pallas as pl
from jax.experimental.pallas import tpu as pltpu


def _round_up(x, m):
    return (x + m - 1) // m * m


_VMEM_TILE_BUDGET = 40 << 20  # bytes of VMEM allowed for the pipeline's tiles


def _budgeted_t_chunk(b_block, H_pad, T):
    """Largest t_chunk (<=32) whose tiles fit the VMEM budget."""
    fixed = (2 * H_pad * H_pad * 2        # Wy bf16 (counted double, to be safe)
             + 2 * b_block * H_pad * 4)   # hy carry / out block, f32
    per_t = 2 * b_block * H_pad * 2       # u bf16, double-buffered
    if _VMEM_TILE_BUDGET <= fixed + per_t:
        return 1
    return int(max(1, min(32, (_VMEM_TILE_BUDGET - fixed) // per_t, T)))


def _looks_like_v7x():
    try:
        return "v7" in jax.devices()[0].device_kind.lower()
    except Exception:
        return False


def _cornn_recurrent_kernel(u_ref, wy_ref, hy_ref):
    """Grid: (batch_blocks, time_chunks).  hy_ref (the output block) is the
    recurrence carry: its index_map is constant along the time-chunk axis, so
    it stays VMEM-resident across the whole sequential loop."""
    # hy = 0 at the start of every batch block's sequence.
    @pl.when(pl.program_id(1) == 0)
    def _():
        hy_ref[...] = jnp.zeros_like(hy_ref)

    t_chunk = u_ref.shape[0]  # static

    def step(t, hy):
        # bf16 x bf16 -> f32 accumulation on the MXU; u streamed as bf16.
        pre = u_ref[t].astype(jnp.float32) + jnp.dot(
            hy.astype(jnp.bfloat16), wy_ref[...],
            preferred_element_type=jnp.float32)
        return jnp.tanh(pre)  # act='tanh'

    unroll = 8 if t_chunk >= 16 else True  # partial unroll for big chunks
    hy_ref[...] = jax.lax.fori_loop(0, t_chunk, step, hy_ref[...],
                                    unroll=unroll)


def cornn_forward(x, wx_t, bx, wy_t, by, wr_t, br, *, t_chunk=None):
    """x: (T, B, n_inp).  Weights are pre-transposed (so kernel does x @ W).
    Returns (output (B, n_out), y_seq=[]) -- the get_seq=False path."""
    T, B, n_inp = x.shape
    H = wx_t.shape[1]                     # n_hid * n_ch
    n_out = wr_t.shape[1]

    x = x.astype(jnp.float32)
    wx_t = wx_t.astype(jnp.float32)
    wy_t = wy_t.astype(jnp.float32)
    wr_t = wr_t.astype(jnp.float32)
    bias = (jnp.asarray(bx, jnp.float32) + jnp.asarray(by, jnp.float32)).reshape(H)
    br = jnp.asarray(br, jnp.float32).reshape(1, n_out)

    if T == 0:
        # hy stays zero -> output = br (guard: grid would never run).
        return jnp.broadcast_to(br, (B, n_out)), []

    # --- TPU-friendly padded sizes. ------------------------------------------
    H_pad = _round_up(H, 128)             # lane multiple
    B_pad = max(_round_up(B, 8), 8)       # sublane multiple

    # --- Batch blocking (the "parallel" grid axis). ---------------------------
    # v7x has 2 TensorCores: split into >=2 blocks (>=64 rows each) so the
    # parallel axis has something to shard.  On v5e/v6e keep M (rows/block)
    # >=128 to amortize MXU fill/drain.
    split_threshold = 128 if _looks_like_v7x() else 256
    b_block = B_pad
    if B_pad >= split_threshold:
        b_block = _round_up((B_pad + 1) // 2, 8)
    # Shrink further only if the VMEM budget would force tiny time chunks.
    while b_block > 128 and _budgeted_t_chunk(b_block, H_pad, T) < 8:
        b_block = _round_up((b_block + 1) // 2, 8)
    b_block = min(b_block, B_pad)
    B_pad = _round_up(B_pad, b_block)
    n_bblocks = B_pad // b_block

    # --- Time chunking (front-padded so any T / any t_chunk works). ----------
    if t_chunk is None:
        t_chunk = _budgeted_t_chunk(b_block, H_pad, T)
    t_chunk = int(max(1, min(t_chunk, T)))
    T_pad = _round_up(T, t_chunk)
    pad_t = T_pad - T
    n_chunks = T_pad // t_chunk

    # --- Hoisted input projection on pre-padded operands, emitted as bf16. ---
    # Front-padding x with zero timesteps and masking the bias there keeps
    # u == 0 exactly for the pad steps -> they are exact no-ops for hy.
    wx_t_pad = jnp.pad(wx_t, ((0, 0), (0, H_pad - H)))
    bias_pad = jnp.pad(bias, (0, H_pad - H))
    x_pad = jnp.pad(x, ((pad_t, 0), (0, B_pad - B), (0, 0)))
    u = jnp.dot(x_pad.reshape(T_pad * B_pad, n_inp), wx_t_pad,
                precision=jax.lax.Precision.HIGHEST)
    u = u.reshape(T_pad, B_pad, H_pad) + bias_pad
    if pad_t:
        mask = (jnp.arange(T_pad) >= pad_t).astype(jnp.float32)
        u = u * mask[:, None, None]
    u = u.astype(jnp.bfloat16)
    # TODO(synk): for n_inp==1 (psMNIST) the Wx projection could be fused into
    # the kernel to avoid materializing u in HBM entirely.

    # Recurrent weight in bf16 (f32 accumulation in the kernel); zero padding
    # keeps the padded hy columns exactly 0.
    wy_pad = jnp.pad(wy_t, ((0, H_pad - H), (0, H_pad - H))).astype(jnp.bfloat16)

    needed = (2 * t_chunk * b_block * H_pad * 2   # u, bf16, double-buffered
              + 2 * H_pad * H_pad * 2             # Wy (counted x2 to be safe)
              + 2 * b_block * H_pad * 4)          # hy carry / out block, f32
    vmem_limit = int(min(56 << 20, max(24 << 20, needed + (4 << 20))))

    def make_call(wy_pipeline_mode):
        wy_kwargs = ({} if wy_pipeline_mode is None
                     else {"pipeline_mode": wy_pipeline_mode})
        return pl.pallas_call(
            _cornn_recurrent_kernel,
            out_shape=jax.ShapeDtypeStruct((B_pad, H_pad), jnp.float32),
            grid_spec=pltpu.PrefetchScalarGridSpec(
                num_scalar_prefetch=0,
                grid=(n_bblocks, n_chunks),
                in_specs=[
                    # u chunk: (t_chunk, b_block, H_pad) at (time c, batch b).
                    pl.BlockSpec((t_chunk, b_block, H_pad),
                                 lambda b, c: (c, b, 0)),
                    # Wy: constant index_map -> VMEM-resident, never re-DMA'd.
                    pl.BlockSpec((H_pad, H_pad), lambda b, c: (0, 0),
                                 **wy_kwargs),
                ],
                # Final hy; constant along c -> the recurrence accumulator.
                out_specs=pl.BlockSpec((b_block, H_pad), lambda b, c: (b, 0)),
            ),
            compiler_params=pltpu.CompilerParams(
                dimension_semantics=("parallel", "arbitrary"),
                vmem_limit_bytes=vmem_limit),
        )

    try:
        # Single-buffer the constant Wy block (saves H_pad^2 * 2 bytes VMEM).
        hy = make_call(pl.Buffered(1))(u, wy_pad)
    except Exception:
        hy = make_call(None)(u, wy_pad)

    # --- Readout in XLA (n_out=10 would force masked stores in-kernel). ------
    out = hy[:B, :H] @ wr_t + br
    return out, []                        # y_seq is [] when get_seq=False


def _reference(x, wx_t, bx, wy_t, by, wr_t, br):
    T, B, _ = x.shape
    H = wx_t.shape[1]
    hy = jnp.zeros((B, H), jnp.float32)
    for t in range(T):
        hy = jnp.tanh(x[t] @ wx_t + bx + hy @ wy_t + by)
    return hy @ wr_t + br


if __name__ == "__main__":
    # Small shapes consistent with the module: seq=8, batch=2, n_inp=4,
    # n_hid=32, n_ch=1, n_out=10.
    T, B, n_inp, n_hid, n_ch, n_out = 8, 2, 4, 32, 1, 10
    H = n_hid * n_ch

    key = jax.random.PRNGKey(0)
    kx, kwx, kbx, kwr, kbr = jax.random.split(key, 5)

    x = jax.random.normal(kx, (T, B, n_inp), jnp.float32)

    # Wx: Linear(n_inp, H) with a deterministic synthetic init.
    wx_t = jax.random.normal(kwx, (n_inp, H), jnp.float32) * (1.0 / jnp.sqrt(n_inp))
    bx = jax.random.normal(kbx, (H,), jnp.float32) * 0.1
    # Wy: init='eye' -> identity weight, zero bias.
    wy_t = jnp.eye(H, dtype=jnp.float32)
    by = jnp.zeros((H,), jnp.float32)
    # Readout: Linear(H, n_out).
    wr_t = jax.random.normal(kwr, (H, n_out), jnp.float32) * (1.0 / jnp.sqrt(H))
    br = jax.random.normal(kbr, (n_out,), jnp.float32) * 0.1

    out, y_seq = cornn_forward(x, wx_t, bx, wy_t, by, wr_t, br)
    out = jax.block_until_ready(out)

    ref = _reference(x, wx_t, bx, wy_t, by, wr_t, br)
    assert out.shape == (B, n_out)
    assert y_seq == []
    # The recurrence streams u and runs the Wy matmul in bf16 (f32 accumulate),
    # so compare against the pure-f32 reference with a relaxed tolerance.
    err = float(jnp.max(jnp.abs(out - ref)))
    assert jnp.allclose(out, ref, atol=5e-2, rtol=5e-2), err
    print("KERNEL_OK")
</pallas_src>

<mosaic_0001>
module attributes {stable_mosaic.version = 11 : i64} {
  func.func @_cornn_recurrent_kernel(%arg0: i32, %arg1: i32, %arg2: memref<8x8x128xbf16, #tpu.memory_space<vmem>>, %arg3: memref<128x128xbf16, #tpu.memory_space<vmem>>, %arg4: memref<8x128xf32, #tpu.memory_space<vmem>>) attributes {dimension_semantics = [#tpu.dimension_semantics<parallel>, #tpu.dimension_semantics<arbitrary>], iteration_bounds = array<i64: 1, 1>, scalar_prefetch = 0 : i64, scratch_operands = 0 : i64, tpu.core_type = #tpu.core_type<tc>, window_params = [{transform_indices = @transform_0, window_bounds = array<i64: 8, 8, 128>}, {pipeline_mode = #tpu.pipeline_mode<synchronous>, transform_indices = @transform_1, window_bounds = array<i64: 128, 128>}, {transform_indices = @transform_2, window_bounds = array<i64: 8, 128>}]} {
    %c0_i32 = arith.constant 0 : i32
    %0 = arith.cmpi eq, %arg1, %c0_i32 : i32
    %1 = arith.extui %0 : i1 to i32
    %c0_i32_0 = arith.constant 0 : i32
    %2 = arith.cmpi ne, %1, %c0_i32_0 : i32
    scf.if %2 {
      %cst_44 = arith.constant 0.000000e+00 : f32
      %77 = vector.broadcast %cst_44 : f32 to vector<8x128xf32>
      %c0_45 = arith.constant 0 : index
      %c0_46 = arith.constant 0 : index
      %78 = vector.load %arg4[%c0_45, %c0_46] : memref<8x128xf32, #tpu.memory_space<vmem>>, vector<8x128xf32>
      tpu.vector_store %arg4[%c0_45, %c0_46], %77 {strides = array<i32>} : memref<8x128xf32, #tpu.memory_space<vmem>>, vector<8x128xf32>,
    } else {
    }
    %c0 = arith.constant 0 : index
    %c0_1 = arith.constant 0 : index
    %3 = vector.load %arg4[%c0, %c0_1] : memref<8x128xf32, #tpu.memory_space<vmem>>, vector<8x128xf32>
    %c0_i32_2 = arith.constant 0 : i32
    %4 = arith.index_cast %c0_i32_2 : i32 to index
    %c0_3 = arith.constant 0 : index
    %c0_4 = arith.constant 0 : index
    %5 = vector.load %arg2[%4, %c0_3, %c0_4] : memref<8x8x128xbf16, #tpu.memory_space<vmem>>, vector<1x8x128xbf16>
    %6 = vector.shape_cast %5 : vector<1x8x128xbf16> to vector<8x128xbf16>
    %7 = arith.extf %6 : vector<8x128xbf16> to vector<8x128xf32>
    %8 = arith.truncf %3 : vector<8x128xf32> to vector<8x128xbf16>
    %c0_5 = arith.constant 0 : index
    %c0_6 = arith.constant 0 : index
    %9 = vector.load %arg3[%c0_5, %c0_6] : memref<128x128xbf16, #tpu.memory_space<vmem>>, vector<128x128xbf16>
    %cst = arith.constant dense<0.000000e+00> : vector<8x128xf32>
    %10 = tpu.matmul %8, %9, %cst {dimension_numbers = #tpu.dot_dimension_numbers<[1], [0], [0], [1], [0, 0, 1, 1], [], []>} : vector<8x128xbf16>, vector<128x128xbf16>, vector<8x128xf32> -> vector<8x128xf32>
    %11 = arith.addf %7, %10 : vector<8x128xf32>
    %12 = math.tanh %11 : vector<8x128xf32>
    %c1_i32 = arith.constant 1 : i32
    %13 = arith.index_cast %c1_i32 : i32 to index
    %c0_7 = arith.constant 0 : index
    %c0_8 = arith.constant 0 : index
    %14 = vector.load %arg2[%13, %c0_7, %c0_8] : memref<8x8x128xbf16, #tpu.memory_space<vmem>>, vector<1x8x128xbf16>
    %15 = vector.shape_cast %14 : vector<1x8x128xbf16> to vector<8x128xbf16>
    %16 = arith.extf %15 : vector<8x128xbf16> to vector<8x128xf32>
    %17 = arith.truncf %12 : vector<8x128xf32> to vector<8x128xbf16>
    %c0_9 = arith.constant 0 : index
    %c0_10 = arith.constant 0 : index
    %18 = vector.load %arg3[%c0_9, %c0_10] : memref<128x128xbf16, #tpu.memory_space<vmem>>, vector<128x128xbf16>
    %cst_11 = arith.constant dense<0.000000e+00> : vector<8x128xf32>
    %19 = tpu.matmul %17, %18, %cst_11 {dimension_numbers = #tpu.dot_dimension_numbers<[1], [0], [0], [1], [0, 0, 1, 1], [], []>} : vector<8x128xbf16>, vector<128x128xbf16>, vector<8x128xf32> -> vector<8x128xf32>
    %20 = arith.addf %16, %19 : vector<8x128xf32>
    %21 = math.tanh %20 : vector<8x128xf32>
    %c2_i32 = arith.constant 2 : i32
    %22 = arith.index_cast %c2_i32 : i32 to index
    %c0_12 = arith.constant 0 : index
    %c0_13 = arith.constant 0 : index
    %23 = vector.load %arg2[%22, %c0_12, %c0_13] : memref<8x8x128xbf16, #tpu.memory_space<vmem>>, vector<1x8x128xbf16>
    %24 = vector.shape_cast %23 : vector<1x8x128xbf16> to vector<8x128xbf16>
    %25 = arith.extf %24 : vector<8x128xbf16> to vector<8x128xf32>
    %26 = arith.truncf %21 : vector<8x128xf32> to vector<8x128xbf16>
    %c0_14 = arith.constant 0 : index
    %c0_15 = arith.constant 0 : index
    %27 = vector.load %arg3[%c0_14, %c0_15] : memref<128x128xbf16, #tpu.memory_space<vmem>>, vector<128x128xbf16>
    %cst_16 = arith.constant dense<0.000000e+00> : vector<8x128xf32>
    %28 = tpu.matmul %26, %27, %cst_16 {dimension_numbers = #tpu.dot_dimension_numbers<[1], [0], [0], [1], [0, 0, 1, 1], [], []>} : vector<8x128xbf16>, vector<128x128xbf16>, vector<8x128xf32> -> vector<8x128xf32>
    %29 = arith.addf %25, %28 : vector<8x128xf32>
    %30 = math.tanh %29 : vector<8x128xf32>
    %c3_i32 = arith.constant 3 : i32
    %31 = arith.index_cast %c3_i32 : i32 to index
    %c0_17 = arith.constant 0 : index
    %c0_18 = arith.constant 0 : index
    %32 = vector.load %arg2[%31, %c0_17, %c0_18] : memref<8x8x128xbf16, #tpu.memory_space<vmem>>, vector<1x8x128xbf16>
    %33 = vector.shape_cast %32 : vector<1x8x128xbf16> to vector<8x128xbf16>
    %34 = arith.extf %33 : vector<8x128xbf16> to vector<8x128xf32>
    %35 = arith.truncf %30 : vector<8x128xf32> to vector<8x128xbf16>
    %c0_19 = arith.constant 0 : index
    %c0_20 = arith.constant 0 : index
    %36 = vector.load %arg3[%c0_19, %c0_20] : memref<128x128xbf16, #tpu.memory_space<vmem>>, vector<128x128xbf16>
    %cst_21 = arith.constant dense<0.000000e+00> : vector<8x128xf32>
    %37 = tpu.matmul %35, %36, %cst_21 {dimension_numbers = #tpu.dot_dimension_numbers<[1], [0], [0], [1], [0, 0, 1, 1], [], []>} : vector<8x128xbf16>, vector<128x128xbf16>, vector<8x128xf32> -> vector<8x128xf32>
    %38 = arith.addf %34, %37 : vector<8x128xf32>
    %39 = math.tanh %38 : vector<8x128xf32>
    %c4_i32 = arith.constant 4 : i32
    %40 = arith.index_cast %c4_i32 : i32 to index
    %c0_22 = arith.constant 0 : index
    %c0_23 = arith.constant 0 : index
    %41 = vector.load %arg2[%40, %c0_22, %c0_23] : memref<8x8x128xbf16, #tpu.memory_space<vmem>>, vector<1x8x128xbf16>
    %42 = vector.shape_cast %41 : vector<1x8x128xbf16> to vector<8x128xbf16>
    %43 = arith.extf %42 : vector<8x128xbf16> to vector<8x128xf32>
    %44 = arith.truncf %39 : vector<8x128xf32> to vector<8x128xbf16>
    %c0_24 = arith.constant 0 : index
    %c0_25 = arith.constant 0 : index
    %45 = vector.load %arg3[%c0_24, %c0_25] : memref<128x128xbf16, #tpu.memory_space<vmem>>, vector<128x128xbf16>
    %cst_26 = arith.constant dense<0.000000e+00> : vector<8x128xf32>
    %46 = tpu.matmul %44, %45, %cst_26 {dimension_numbers = #tpu.dot_dimension_numbers<[1], [0], [0], [1], [0, 0, 1, 1], [], []>} : vector<8x128xbf16>, vector<128x128xbf16>, vector<8x128xf32> -> vector<8x128xf32>
    %47 = arith.addf %43, %46 : vector<8x128xf32>
    %48 = math.tanh %47 : vector<8x128xf32>
    %c5_i32 = arith.constant 5 : i32
    %49 = arith.index_cast %c5_i32 : i32 to index
    %c0_27 = arith.constant 0 : index
    %c0_28 = arith.constant 0 : index
    %50 = vector.load %arg2[%49, %c0_27, %c0_28] : memref<8x8x128xbf16, #tpu.memory_space<vmem>>, vector<1x8x128xbf16>
    %51 = vector.shape_cast %50 : vector<1x8x128xbf16> to vector<8x128xbf16>
    %52 = arith.extf %51 : vector<8x128xbf16> to vector<8x128xf32>
    %53 = arith.truncf %48 : vector<8x128xf32> to vector<8x128xbf16>
    %c0_29 = arith.constant 0 : index
    %c0_30 = arith.constant 0 : index
    %54 = vector.load %arg3[%c0_29, %c0_30] : memref<128x128xbf16, #tpu.memory_space<vmem>>, vector<128x128xbf16>
    %cst_31 = arith.constant dense<0.000000e+00> : vector<8x128xf32>
    %55 = tpu.matmul %53, %54, %cst_31 {dimension_numbers = #tpu.dot_dimension_numbers<[1], [0], [0], [1], [0, 0, 1, 1], [], []>} : vector<8x128xbf16>, vector<128x128xbf16>, vector<8x128xf32> -> vector<8x128xf32>
    %56 = arith.addf %52, %55 : vector<8x128xf32>
    %57 = math.tanh %56 : vector<8x128xf32>
    %c6_i32 = arith.constant 6 : i32
    %58 = arith.index_cast %c6_i32 : i32 to index
    %c0_32 = arith.constant 0 : index
    %c0_33 = arith.constant 0 : index
    %59 = vector.load %arg2[%58, %c0_32, %c0_33] : memref<8x8x128xbf16, #tpu.memory_space<vmem>>, vector<1x8x128xbf16>
    %60 = vector.shape_cast %59 : vector<1x8x128xbf16> to vector<8x128xbf16>
    %61 = arith.extf %60 : vector<8x128xbf16> to vector<8x128xf32>
    %62 = arith.truncf %57 : vector<8x128xf32> to vector<8x128xbf16>
    %c0_34 = arith.constant 0 : index
    %c0_35 = arith.constant 0 : index
    %63 = vector.load %arg3[%c0_34, %c0_35] : memref<128x128xbf16, #tpu.memory_space<vmem>>, vector<128x128xbf16>
    %cst_36 = arith.constant dense<0.000000e+00> : vector<8x128xf32>
    %64 = tpu.matmul %62, %63, %cst_36 {dimension_numbers = #tpu.dot_dimension_numbers<[1], [0], [0], [1], [0, 0, 1, 1], [], []>} : vector<8x128xbf16>, vector<128x128xbf16>, vector<8x128xf32> -> vector<8x128xf32>
    %65 = arith.addf %61, %64 : vector<8x128xf32>
    %66 = math.tanh %65 : vector<8x128xf32>
    %c7_i32 = arith.constant 7 : i32
    %67 = arith.index_cast %c7_i32 : i32 to index
    %c0_37 = arith.constant 0 : index
    %c0_38 = arith.constant 0 : index
    %68 = vector.load %arg2[%67, %c0_37, %c0_38] : memref<8x8x128xbf16, #tpu.memory_space<vmem>>, vector<1x8x128xbf16>
    %69 = vector.shape_cast %68 : vector<1x8x128xbf16> to vector<8x128xbf16>
    %70 = arith.extf %69 : vector<8x128xbf16> to vector<8x128xf32>
    %71 = arith.truncf %66 : vector<8x128xf32> to vector<8x128xbf16>
    %c0_39 = arith.constant 0 : index
    %c0_40 = arith.constant 0 : index
    %72 = vector.load %arg3[%c0_39, %c0_40] : memref<128x128xbf16, #tpu.memory_space<vmem>>, vector<128x128xbf16>
    %cst_41 = arith.constant dense<0.000000e+00> : vector<8x128xf32>
    %73 = tpu.matmul %71, %72, %cst_41 {dimension_numbers = #tpu.dot_dimension_numbers<[1], [0], [0], [1], [0, 0, 1, 1], [], []>} : vector<8x128xbf16>, vector<128x128xbf16>, vector<8x128xf32> -> vector<8x128xf32>
    %74 = arith.addf %70, %73 : vector<8x128xf32>
    %75 = math.tanh %74 : vector<8x128xf32>
    %c8_i32 = arith.constant 8 : i32
    %c0_42 = arith.constant 0 : index
    %c0_43 = arith.constant 0 : index
    %76 = vector.load %arg4[%c0_42, %c0_43] : memref<8x128xf32, #tpu.memory_space<vmem>>, vector<8x128xf32>
    tpu.vector_store %arg4[%c0_42, %c0_43], %75 {strides = array<i32>} : memref<8x128xf32, #tpu.memory_space<vmem>>, vector<8x128xf32>,
    return
  }
  func.func @transform_0(%arg0: i32, %arg1: i32) -> (i32, i32, i32) {
    %c0_i32 = arith.constant 0 : i32
    %c0_i32_0 = arith.constant 0 : i32
    return %arg1, %arg0, %c0_i32 : i32, i32, i32
  }
  func.func @transform_1(%arg0: i32, %arg1: i32) -> (i32, i32) {
    %c0_i32 = arith.constant 0 : i32
    %c0_i32_0 = arith.constant 0 : i32
    %c0_i32_1 = arith.constant 0 : i32
    return %c0_i32, %c0_i32_0 : i32, i32
  }
  func.func @transform_2(%arg0: i32, %arg1: i32) -> (i32, i32) {
    %c0_i32 = arith.constant 0 : i32
    %c0_i32_0 = arith.constant 0 : i32
    return %arg0, %c0_i32 : i32, i32
  }
}

module attributes {stable_mosaic.version = 11 : i64} {
  func.func @_cornn_recurrent_kernel(%arg0: i32, %arg1: i32, %arg2: memref<8x8x128xbf16, #tpu.memory_space<vmem>>, %arg3: memref<128x128xbf16, #tpu.memory_space<vmem>>, %arg4: memref<8x128xf32, #tpu.memory_space<vmem>>) attributes {dimension_semantics = [#tpu.dimension_semantics<parallel>, #tpu.dimension_semantics<arbitrary>], iteration_bounds = array<i64: 1, 1>, scalar_prefetch = 0 : i64, scratch_operands = 0 : i64, tpu.core_type = #tpu.core_type<tc>, window_params = [{transform_indices = @transform_0, window_bounds = array<i64: 8, 8, 128>}, {pipeline_mode = #tpu.pipeline_mode<synchronous>, transform_indices = @transform_1, window_bounds = array<i64: 128, 128>}, {transform_indices = @transform_2, window_bounds = array<i64: 8, 128>}]} {
    %c0_i32 = arith.constant 0 : i32
    %0 = arith.cmpi eq, %arg1, %c0_i32 : i32
    %1 = arith.extui %0 : i1 to i32
    %c0_i32_0 = arith.constant 0 : i32
    %2 = arith.cmpi ne, %1, %c0_i32_0 : i32
    scf.if %2 {
      %cst_44 = arith.constant 0.000000e+00 : f32
      %77 = vector.broadcast %cst_44 : f32 to vector<8x128xf32>
      %c0_45 = arith.constant 0 : index
      %c0_46 = arith.constant 0 : index
      %78 = vector.load %arg4[%c0_45, %c0_46] : memref<8x128xf32, #tpu.memory_space<vmem>>, vector<8x128xf32>
      tpu.vector_store %arg4[%c0_45, %c0_46], %77 {strides = array<i32>} : memref<8x128xf32, #tpu.memory_space<vmem>>, vector<8x128xf32>,
    } else {
    }
    %c0 = arith.constant 0 : index
    %c0_1 = arith.constant 0 : index
    %3 = vector.load %arg4[%c0, %c0_1] : memref<8x128xf32, #tpu.memory_space<vmem>>, vector<8x128xf32>
    %c0_i32_2 = arith.constant 0 : i32
    %4 = arith.index_cast %c0_i32_2 : i32 to index
    %c0_3 = arith.constant 0 : index
    %c0_4 = arith.constant 0 : index
    %5 = vector.load %arg2[%4, %c0_3, %c0_4] : memref<8x8x128xbf16, #tpu.memory_space<vmem>>, vector<1x8x128xbf16>
    %6 = vector.shape_cast %5 : vector<1x8x128xbf16> to vector<8x128xbf16>
    %7 = arith.extf %6 : vector<8x128xbf16> to vector<8x128xf32>
    %8 = arith.truncf %3 : vector<8x128xf32> to vector<8x128xbf16>
    %c0_5 = arith.constant 0 : index
    %c0_6 = arith.constant 0 : index
    %9 = vector.load %arg3[%c0_5, %c0_6] : memref<128x128xbf16, #tpu.memory_space<vmem>>, vector<128x128xbf16>
    %cst = arith.constant dense<0.000000e+00> : vector<8x128xf32>
    %10 = tpu.matmul %8, %9, %cst {dimension_numbers = #tpu.dot_dimension_numbers<[1], [0], [0], [1], [0, 0, 1, 1], [], []>} : vector<8x128xbf16>, vector<128x128xbf16>, vector<8x128xf32> -> vector<8x128xf32>
    %11 = arith.addf %7, %10 : vector<8x128xf32>
    %12 = math.tanh %11 : vector<8x128xf32>
    %c1_i32 = arith.constant 1 : i32
    %13 = arith.index_cast %c1_i32 : i32 to index
    %c0_7 = arith.constant 0 : index
    %c0_8 = arith.constant 0 : index
    %14 = vector.load %arg2[%13, %c0_7, %c0_8] : memref<8x8x128xbf16, #tpu.memory_space<vmem>>, vector<1x8x128xbf16>
    %15 = vector.shape_cast %14 : vector<1x8x128xbf16> to vector<8x128xbf16>
    %16 = arith.extf %15 : vector<8x128xbf16> to vector<8x128xf32>
    %17 = arith.truncf %12 : vector<8x128xf32> to vector<8x128xbf16>
    %c0_9 = arith.constant 0 : index
    %c0_10 = arith.constant 0 : index
    %18 = vector.load %arg3[%c0_9, %c0_10] : memref<128x128xbf16, #tpu.memory_space<vmem>>, vector<128x128xbf16>
    %cst_11 = arith.constant dense<0.000000e+00> : vector<8x128xf32>
    %19 = tpu.matmul %17, %18, %cst_11 {dimension_numbers = #tpu.dot_dimension_numbers<[1], [0], [0], [1], [0, 0, 1, 1], [], []>} : vector<8x128xbf16>, vector<128x128xbf16>, vector<8x128xf32> -> vector<8x128xf32>
    %20 = arith.addf %16, %19 : vector<8x128xf32>
    %21 = math.tanh %20 : vector<8x128xf32>
    %c2_i32 = arith.constant 2 : i32
    %22 = arith.index_cast %c2_i32 : i32 to index
    %c0_12 = arith.constant 0 : index
    %c0_13 = arith.constant 0 : index
    %23 = vector.load %arg2[%22, %c0_12, %c0_13] : memref<8x8x128xbf16, #tpu.memory_space<vmem>>, vector<1x8x128xbf16>
    %24 = vector.shape_cast %23 : vector<1x8x128xbf16> to vector<8x128xbf16>
    %25 = arith.extf %24 : vector<8x128xbf16> to vector<8x128xf32>
    %26 = arith.truncf %21 : vector<8x128xf32> to vector<8x128xbf16>
    %c0_14 = arith.constant 0 : index
    %c0_15 = arith.constant 0 : index
    %27 = vector.load %arg3[%c0_14, %c0_15] : memref<128x128xbf16, #tpu.memory_space<vmem>>, vector<128x128xbf16>
    %cst_16 = arith.constant dense<0.000000e+00> : vector<8x128xf32>
    %28 = tpu.matmul %26, %27, %cst_16 {dimension_numbers = #tpu.dot_dimension_numbers<[1], [0], [0], [1], [0, 0, 1, 1], [], []>} : vector<8x128xbf16>, vector<128x128xbf16>, vector<8x128xf32> -> vector<8x128xf32>
    %29 = arith.addf %25, %28 : vector<8x128xf32>
    %30 = math.tanh %29 : vector<8x128xf32>
    %c3_i32 = arith.constant 3 : i32
    %31 = arith.index_cast %c3_i32 : i32 to index
    %c0_17 = arith.constant 0 : index
    %c0_18 = arith.constant 0 : index
    %32 = vector.load %arg2[%31, %c0_17, %c0_18] : memref<8x8x128xbf16, #tpu.memory_space<vmem>>, vector<1x8x128xbf16>
    %33 = vector.shape_cast %32 : vector<1x8x128xbf16> to vector<8x128xbf16>
    %34 = arith.extf %33 : vector<8x128xbf16> to vector<8x128xf32>
    %35 = arith.truncf %30 : vector<8x128xf32> to vector<8x128xbf16>
    %c0_19 = arith.constant 0 : index
    %c0_20 = arith.constant 0 : index
    %36 = vector.load %arg3[%c0_19, %c0_20] : memref<128x128xbf16, #tpu.memory_space<vmem>>, vector<128x128xbf16>
    %cst_21 = arith.constant dense<0.000000e+00> : vector<8x128xf32>
    %37 = tpu.matmul %35, %36, %cst_21 {dimension_numbers = #tpu.dot_dimension_numbers<[1], [0], [0], [1], [0, 0, 1, 1], [], []>} : vector<8x128xbf16>, vector<128x128xbf16>, vector<8x128xf32> -> vector<8x128xf32>
    %38 = arith.addf %34, %37 : vector<8x128xf32>
    %39 = math.tanh %38 : vector<8x128xf32>
    %c4_i32 = arith.constant 4 : i32
    %40 = arith.index_cast %c4_i32 : i32 to index
    %c0_22 = arith.constant 0 : index
    %c0_23 = arith.constant 0 : index
    %41 = vector.load %arg2[%40, %c0_22, %c0_23] : memref<8x8x128xbf16, #tpu.memory_space<vmem>>, vector<1x8x128xbf16>
    %42 = vector.shape_cast %41 : vector<1x8x128xbf16> to vector<8x128xbf16>
    %43 = arith.extf %42 : vector<8x128xbf16> to vector<8x128xf32>
    %44 = arith.truncf %39 : vector<8x128xf32> to vector<8x128xbf16>
    %c0_24 = arith.constant 0 : index
    %c0_25 = arith.constant 0 : index
    %45 = vector.load %arg3[%c0_24, %c0_25] : memref<128x128xbf16, #tpu.memory_space<vmem>>, vector<128x128xbf16>
    %cst_26 = arith.constant dense<0.000000e+00> : vector<8x128xf32>
    %46 = tpu.matmul %44, %45, %cst_26 {dimension_numbers = #tpu.dot_dimension_numbers<[1], [0], [0], [1], [0, 0, 1, 1], [], []>} : vector<8x128xbf16>, vector<128x128xbf16>, vector<8x128xf32> -> vector<8x128xf32>
    %47 = arith.addf %43, %46 : vector<8x128xf32>
    %48 = math.tanh %47 : vector<8x128xf32>
    %c5_i32 = arith.constant 5 : i32
    %49 = arith.index_cast %c5_i32 : i32 to index
    %c0_27 = arith.constant 0 : index
    %c0_28 = arith.constant 0 : index
    %50 = vector.load %arg2[%49, %c0_27, %c0_28] : memref<8x8x128xbf16, #tpu.memory_space<vmem>>, vector<1x8x128xbf16>
    %51 = vector.shape_cast %50 : vector<1x8x128xbf16> to vector<8x128xbf16>
    %52 = arith.extf %51 : vector<8x128xbf16> to vector<8x128xf32>
    %53 = arith.truncf %48 : vector<8x128xf32> to vector<8x128xbf16>
    %c0_29 = arith.constant 0 : index
    %c0_30 = arith.constant 0 : index
    %54 = vector.load %arg3[%c0_29, %c0_30] : memref<128x128xbf16, #tpu.memory_space<vmem>>, vector<128x128xbf16>
    %cst_31 = arith.constant dense<0.000000e+00> : vector<8x128xf32>
    %55 = tpu.matmul %53, %54, %cst_31 {dimension_numbers = #tpu.dot_dimension_numbers<[1], [0], [0], [1], [0, 0, 1, 1], [], []>} : vector<8x128xbf16>, vector<128x128xbf16>, vector<8x128xf32> -> vector<8x128xf32>
    %56 = arith.addf %52, %55 : vector<8x128xf32>
    %57 = math.tanh %56 : vector<8x128xf32>
    %c6_i32 = arith.constant 6 : i32
    %58 = arith.index_cast %c6_i32 : i32 to index
    %c0_32 = arith.constant 0 : index
    %c0_33 = arith.constant 0 : index
    %59 = vector.load %arg2[%58, %c0_32, %c0_33] : memref<8x8x128xbf16, #tpu.memory_space<vmem>>, vector<1x8x128xbf16>
    %60 = vector.shape_cast %59 : vector<1x8x128xbf16> to vector<8x128xbf16>
    %61 = arith.extf %60 : vector<8x128xbf16> to vector<8x128xf32>
    %62 = arith.truncf %57 : vector<8x128xf32> to vector<8x128xbf16>
    %c0_34 = arith.constant 0 : index
    %c0_35 = arith.constant 0 : index
    %63 = vector.load %arg3[%c0_34, %c0_35] : memref<128x128xbf16, #tpu.memory_space<vmem>>, vector<128x128xbf16>
    %cst_36 = arith.constant dense<0.000000e+00> : vector<8x128xf32>
    %64 = tpu.matmul %62, %63, %cst_36 {dimension_numbers = #tpu.dot_dimension_numbers<[1], [0], [0], [1], [0, 0, 1, 1], [], []>} : vector<8x128xbf16>, vector<128x128xbf16>, vector<8x128xf32> -> vector<8x128xf32>
    %65 = arith.addf %61, %64 : vector<8x128xf32>
    %66 = math.tanh %65 : vector<8x128xf32>
    %c7_i32 = arith.constant 7 : i32
    %67 = arith.index_cast %c7_i32 : i32 to index
    %c0_37 = arith.constant 0 : index
    %c0_38 = arith.constant 0 : index
    %68 = vector.load %arg2[%67, %c0_37, %c0_38] : memref<8x8x128xbf16, #tpu.memory_space<vmem>>, vector<1x8x128xbf16>
    %69 = vector.shape_cast %68 : vector<1x8x128xbf16> to vector<8x128xbf16>
    %70 = arith.extf %69 : vector<8x128xbf16> to vector<8x128xf32>
    %71 = arith.truncf %66 : vector<8x128xf32> to vector<8x128xbf16>
    %c0_39 = arith.constant 0 : index
    %c0_40 = arith.constant 0 : index
    %72 = vector.load %arg3[%c0_39, %c0_40] : memref<128x128xbf16, #tpu.memory_space<vmem>>, vector<128x128xbf16>
    %cst_41 = arith.constant dense<0.000000e+00> : vector<8x128xf32>
    %73 = tpu.matmul %71, %72, %cst_41 {dimension_numbers = #tpu.dot_dimension_numbers<[1], [0], [0], [1], [0, 0, 1, 1], [], []>} : vector<8x128xbf16>, vector<128x128xbf16>, vector<8x128xf32> -> vector<8x128xf32>
    %74 = arith.addf %70, %73 : vector<8x128xf32>
    %75 = math.tanh %74 : vector<8x128xf32>
    %c8_i32 = arith.constant 8 : i32
    %c0_42 = arith.constant 0 : index
    %c0_43 = arith.constant 0 : index
    %76 = vector.load %arg4[%c0_42, %c0_43] : memref<8x128xf32, #tpu.memory_space<vmem>>, vector<8x128xf32>
    tpu.vector_store %arg4[%c0_42, %c0_43], %75 {strides = array<i32>} : memref<8x128xf32, #tpu.memory_space<vmem>>, vector<8x128xf32>,
    return
  }
  func.func @transform_0(%arg0: i32, %arg1: i32) -> (i32, i32, i32) {
    %c0_i32 = arith.constant 0 : i32
    %c0_i32_0 = arith.constant 0 : i32
    return %arg1, %arg0, %c0_i32 : i32, i32, i32
  }
  func.func @transform_1(%arg0: i32, %arg1: i32) -> (i32, i32) {
    %c0_i32 = arith.constant 0 : i32
    %c0_i32_0 = arith.constant 0 : i32
    %c0_i32_1 = arith.constant 0 : i32
    return %c0_i32, %c0_i32_0 : i32, i32
  }
  func.func @transform_2(%arg0: i32, %arg1: i32) -> (i32, i32) {
    %c0_i32 = arith.constant 0 : i32
    %c0_i32_0 = arith.constant 0 : i32
    return %arg0, %c0_i32 : i32, i32
  }
}

</mosaic_0001>

<llo_original>
// kernel: tpu_custom_call.1
$region0: #{tpu_custom_call.1}
  #allocation0 [shape = 'u32[]', space=smem, size = 0x4, offset = 0x4, fixed_abs, tag = 'smem constant byte address 0x4 - core index']
  #allocation1 [shape = 'u32[72,128]{1,0:T(1,128)}', space=vmem, size = 0x9000, scoped, tag = 'internal scratch']
  %s0 = inlined_call_operand.hbm [shape: bf16[8,8,128], index: 0, kind: input, shape index: {}]
  %s1 = inlined_call_operand.hbm [shape: bf16[128,128], index: 1, kind: input, shape index: {}]
  %s2 = inlined_call_operand.hbm [shape: f32[8,128], index: 2, kind: output, shape index: {}]
  %s3 = sld [smem:[#allocation0]]
  $region30: #{tpu_custom_call.1} parent=0
    _
  %s5 = ssub.s32 1, %s3
  %s6 = scalar_select 0, %s5, %s3
  $region1: #{tpu_custom_call.1} parent=0
    #allocation2 [shape = 'u8[16384]{0}', space=vmem, size = 0x4000, scoped, tag = 'input window, operand 0, single buffered']
    #allocation3 [shape = 's32[1]{0}', space=sflag, size = 0x4, scoped, tag = 'scoped memory for tpu_custom_call.1']
    #allocation4 [shape = 's32[1]{0}', space=sflag, size = 0x4, scoped, tag = 'scoped memory for tpu_custom_call.1']
    #allocation5 [shape = 'u8[32768]{0}', space=vmem, size = 0x8000, scoped, tag = 'input window, operand 1, single buffered']
    #allocation6 [shape = 's32[1]{0}', space=sflag, size = 0x4, scoped, tag = 'scoped memory for tpu_custom_call.1']
    #allocation7 [shape = 'u8[4096]{0}', space=vmem, size = 0x1000, scoped, tag = 'output window, operand 0, single buffered']
    %7 = vsyncpa [#allocation3], 0
    %8 = vsyncpa [#allocation6], 0
    %9 = vsyncpa [#allocation4], 0
    // Predicated region
    $region2: #{tpu_custom_call.1} parent=1 // pred_check
      _
    $region3: #{tpu_custom_call.1} parent=1 // pred_check_branch
      %11 = sbr.rel (0) target = $region5
    $region4: #{tpu_custom_call.1} parent=1 // pred_region
      %13 = vsyncadd [#allocation3], 0
      %s14 = sshll.u32 %s0, 4
      %s15 = int_to_ptr.hbm [resolvable:$true] %s14
      %s16 = sshll.u32 [#allocation2], 4
      %s17 = int_to_ptr.vmem [resolvable:$true] %s16
      %22 = dma.hbm_to_vmem [thread:$0]  %s15, 512, %s17, [#allocation3], 64, 64, 4
    $region5: #{tpu_custom_call.1} parent=1 // pred_fallthru
      _
    // Predicated region
    $region6: #{tpu_custom_call.1} parent=1 // pred_check
      _
    $region7: #{tpu_custom_call.1} parent=1 // pred_check_branch
      %24 = sbr.rel (0) target = $region9
    $region8: #{tpu_custom_call.1} parent=1 // pred_region
      %26 = vsyncadd [#allocation6], 0
      %s27 = sshll.u32 %s1, 4
      %s28 = int_to_ptr.hbm [resolvable:$true] %s27
      %s29 = sshll.u32 [#allocation5], 4
      %s30 = int_to_ptr.vmem [resolvable:$true] %s29
      %35 = dma.hbm_to_vmem [thread:$0]  %s28, 1024, %s30, [#allocation6], 64, 64, 4
    $region9: #{tpu_custom_call.1} parent=1 // pred_fallthru
      _
    // Predicated region
    $region10: #{tpu_custom_call.1} parent=1 // pred_check
      _
    $region11: #{tpu_custom_call.1} parent=1 // pred_check_branch
      %37 = sbr.rel (0) target = $region13
    $region12: #{tpu_custom_call.1} parent=1 // pred_region
      %39 = dma.done [#allocation3], 512
    $region13: #{tpu_custom_call.1} parent=1 // pred_fallthru
      _
    // Predicated region
    $region14: #{tpu_custom_call.1} parent=1 // pred_check
      _
    $region15: #{tpu_custom_call.1} parent=1 // pred_check_branch
      %41 = sbr.rel (0) target = $region17
    $region16: #{tpu_custom_call.1} parent=1 // pred_region
      %43 = dma.done [#allocation6], 1024
    $region17: #{tpu_custom_call.1} parent=1 // pred_fallthru
      _
    %p44 = scmp.eq.s32.totalorder 0, 0
    // Predicated region
    $region18: #{tpu_custom_call.1} parent=1 // pred_check
      %p45 = pneg %p44
    $region19: #{tpu_custom_call.1} parent=1 // pred_check_branch
      %47 = sbr.rel (%p45) target = $region21
    $region20: #{tpu_custom_call.1} parent=1 // pred_region
      %48 = vst [vmem:[#allocation7] sm:$0xff] 0.0
    $region21: #{tpu_custom_call.1} parent=1 // pred_fallthru
      _
    %v49 = vld [vmem:[#allocation7] sm:$0xff]
    %v50 = vld [vmem:[#allocation2] sm:$0xf]
    %v51 = vunpack.c.l.bf16 %v50
    %v52 = vpack.c.bf16 %v49, %v49
    %v53 = vld [vmem:[#allocation5] sm:$0xf]
    %v54 = vld [vmem:[#allocation5 + $0x4] sm:$0xf]
    %v55 = vld [vmem:[#allocation5 + $0x8] sm:$0xf]
    %v56 = vld [vmem:[#allocation5 + $0xc] sm:$0xf]
    %v57 = vld [vmem:[#allocation5 + $0x10] sm:$0xf]
    %v58 = vld [vmem:[#allocation5 + $0x14] sm:$0xf]
    %v59 = vld [vmem:[#allocation5 + $0x18] sm:$0xf]
    %v60 = vld [vmem:[#allocation5 + $0x1c] sm:$0xf]
    %v61 = vld [vmem:[#allocation5 + $0x20] sm:$0xf]
    %v62 = vld [vmem:[#allocation5 + $0x24] sm:$0xf]
    %v63 = vld [vmem:[#allocation5 + $0x28] sm:$0xf]
    %v64 = vld [vmem:[#allocation5 + $0x2c] sm:$0xf]
    %v65 = vld [vmem:[#allocation5 + $0x30] sm:$0xf]
    %v66 = vld [vmem:[#allocation5 + $0x34] sm:$0xf]
    %v67 = vld [vmem:[#allocation5 + $0x38] sm:$0xf]
    %v68 = vld [vmem:[#allocation5 + $0x3c] sm:$0xf]
    %v85 = vunpack.c.l.b16 %v53
    %v86 = vunpack.c.l.b16 %v54
    %v87 = vunpack.c.l.b16 %v55
    %v88 = vunpack.c.l.b16 %v56
    %v89 = vunpack.c.l.b16 %v57
    %v90 = vunpack.c.l.b16 %v58
    %v91 = vunpack.c.l.b16 %v59
    %v92 = vunpack.c.l.b16 %v60
    %v93 = vunpack.c.l.b16 %v61
    %v94 = vunpack.c.l.b16 %v62
    %v95 = vunpack.c.l.b16 %v63
    %v96 = vunpack.c.l.b16 %v64
    %v97 = vunpack.c.l.b16 %v65
    %v98 = vunpack.c.l.b16 %v66
    %v99 = vunpack.c.l.b16 %v67
    %v100 = vunpack.c.l.b16 %v68
    %v101 = vpack.c.b16 %v86, %v85
    %v102 = vpack.c.b16 %v88, %v87
    %v103 = vpack.c.b16 %v90, %v89
    %v104 = vpack.c.b16 %v92, %v91
    %v105 = vpack.c.b16 %v94, %v93
    %v106 = vpack.c.b16 %v96, %v95
    %v107 = vpack.c.b16 %v98, %v97
    %v108 = vpack.c.b16 %v100, %v99
    %117 = vmatpush.bf16.msra.mxu0 %v108
    %118 = vmatpush.bf16.msra.mxu0 %v107
    %119 = vmatpush.bf16.msra.mxu0 %v106
    %120 = vmatpush.bf16.msra.mxu0 %v105
    %121 = vmatpush.bf16.msra.mxu0 %v104
    %122 = vmatpush.bf16.msra.mxu0 %v103
    %123 = vmatpush.bf16.msra.mxu0 %v102
    %124 = vmatpush.bf16.msra.mxu0 %v101
    %125 = vmatmul.bf16.gmra.mxu0 %v52
    %v126 = vpop.f32.mrf.mxu0
    %v127 = vadd.f32 0.0, %v126
    %v128 = vpop.f32.mrf.mxu0
    %129 = vdwg.mxu0
    %v130 = vadd.f32 %v51, %v127
    %v131 = vtanh.pop %v130
    %s132 = scalar_lea.vmem [#allocation2], 4
    %v133 = vld [vmem:[%s132] sm:$0xf]
    %v134 = vunpack.c.l.bf16 %v133
    %v135 = vpack.c.bf16 %v131, %v131
    %136 = vmatpush.bf16.msra.mxu0 %v108
    %137 = vmatpush.bf16.msra.mxu0 %v107
    %138 = vmatpush.bf16.msra.mxu0 %v106
    %139 = vmatpush.bf16.msra.mxu0 %v105
    %140 = vmatpush.bf16.msra.mxu0 %v104
    %141 = vmatpush.bf16.msra.mxu0 %v103
    %142 = vmatpush.bf16.msra.mxu0 %v102
    %143 = vmatpush.bf16.msra.mxu0 %v101
    %144 = vmatmul.bf16.gmra.mxu0 %v135
    %v145 = vpop.f32.mrf.mxu0
    %v146 = vadd.f32 0.0, %v145
    %v147 = vpop.f32.mrf.mxu0
    %148 = vdwg.mxu0
    %v149 = vadd.f32 %v134, %v146
    %v150 = vtanh.pop %v149
    %s151 = scalar_lea.vmem [#allocation2], 8
    %v152 = vld [vmem:[%s151] sm:$0xf]
    %v153 = vunpack.c.l.bf16 %v152
    %v154 = vpack.c.bf16 %v150, %v150
    %155 = vmatpush.bf16.msra.mxu0 %v108
    %156 = vmatpush.bf16.msra.mxu0 %v107
    %157 = vmatpush.bf16.msra.mxu0 %v106
    %158 = vmatpush.bf16.msra.mxu0 %v105
    %159 = vmatpush.bf16.msra.mxu0 %v104
    %160 = vmatpush.bf16.msra.mxu0 %v103
    %161 = vmatpush.bf16.msra.mxu0 %v102
    %162 = vmatpush.bf16.msra.mxu0 %v101
    %163 = vmatmul.bf16.gmra.mxu0 %v154
    %v164 = vpop.f32.mrf.mxu0
    %v165 = vadd.f32 0.0, %v164
    %v166 = vpop.f32.mrf.mxu0
    %167 = vdwg.mxu0
    %v168 = vadd.f32 %v153, %v165
    %v169 = vtanh.pop %v168
    %s170 = scalar_lea.vmem [#allocation2], 12
    %v171 = vld [vmem:[%s170] sm:$0xf]
    %v172 = vunpack.c.l.bf16 %v171
    %v173 = vpack.c.bf16 %v169, %v169
    %174 = vmatpush.bf16.msra.mxu0 %v108
    %175 = vmatpush.bf16.msra.mxu0 %v107
    %176 = vmatpush.bf16.msra.mxu0 %v106
    %177 = vmatpush.bf16.msra.mxu0 %v105
    %178 = vmatpush.bf16.msra.mxu0 %v104
    %179 = vmatpush.bf16.msra.mxu0 %v103
    %180 = vmatpush.bf16.msra.mxu0 %v102
    %181 = vmatpush.bf16.msra.mxu0 %v101
    %182 = vmatmul.bf16.gmra.mxu0 %v173
    %v183 = vpop.f32.mrf.mxu0
    %v184 = vadd.f32 0.0, %v183
    %v185 = vpop.f32.mrf.mxu0
    %186 = vdwg.mxu0
    %v187 = vadd.f32 %v172, %v184
    %v188 = vtanh.pop %v187
    %s189 = scalar_lea.vmem [#allocation2], 16
    %v190 = vld [vmem:[%s189] sm:$0xf]
    %v191 = vunpack.c.l.bf16 %v190
    %v192 = vpack.c.bf16 %v188, %v188
    %193 = vmatpush.bf16.msra.mxu0 %v108
    %194 = vmatpush.bf16.msra.mxu0 %v107
    %195 = vmatpush.bf16.msra.mxu0 %v106
    %196 = vmatpush.bf16.msra.mxu0 %v105
    %197 = vmatpush.bf16.msra.mxu0 %v104
    %198 = vmatpush.bf16.msra.mxu0 %v103
    %199 = vmatpush.bf16.msra.mxu0 %v102
    %200 = vmatpush.bf16.msra.mxu0 %v101
    %201 = vmatmul.bf16.gmra.mxu0 %v192
    %v202 = vpop.f32.mrf.mxu0
    %v203 = vadd.f32 0.0, %v202
    %v204 = vpop.f32.mrf.mxu0
    %205 = vdwg.mxu0
    %v206 = vadd.f32 %v191, %v203
    %v207 = vtanh.pop %v206
    %s208 = scalar_lea.vmem [#allocation2], 20
    %v209 = vld [vmem:[%s208] sm:$0xf]
    %v210 = vunpack.c.l.bf16 %v209
    %v211 = vpack.c.bf16 %v207, %v207
    %212 = vmatpush.bf16.msra.mxu0 %v108
    %213 = vmatpush.bf16.msra.mxu0 %v107
    %214 = vmatpush.bf16.msra.mxu0 %v106
    %215 = vmatpush.bf16.msra.mxu0 %v105
    %216 = vmatpush.bf16.msra.mxu0 %v104
    %217 = vmatpush.bf16.msra.mxu0 %v103
    %218 = vmatpush.bf16.msra.mxu0 %v102
    %219 = vmatpush.bf16.msra.mxu0 %v101
    %220 = vmatmul.bf16.gmra.mxu0 %v211
    %v221 = vpop.f32.mrf.mxu0
    %v222 = vadd.f32 0.0, %v221
    %v223 = vpop.f32.mrf.mxu0
    %224 = vdwg.mxu0
    %v225 = vadd.f32 %v210, %v222
    %v226 = vtanh.pop %v225
    %s227 = scalar_lea.vmem [#allocation2], 24
    %v228 = vld [vmem:[%s227] sm:$0xf]
    %v229 = vunpack.c.l.bf16 %v228
    %v230 = vpack.c.bf16 %v226, %v226
    %231 = vmatpush.bf16.msra.mxu0 %v108
    %232 = vmatpush.bf16.msra.mxu0 %v107
    %233 = vmatpush.bf16.msra.mxu0 %v106
    %234 = vmatpush.bf16.msra.mxu0 %v105
    %235 = vmatpush.bf16.msra.mxu0 %v104
    %236 = vmatpush.bf16.msra.mxu0 %v103
    %237 = vmatpush.bf16.msra.mxu0 %v102
    %238 = vmatpush.bf16.msra.mxu0 %v101
    %239 = vmatmul.bf16.gmra.mxu0 %v230
    %v240 = vpop.f32.mrf.mxu0
    %v241 = vadd.f32 0.0, %v240
    %v242 = vpop.f32.mrf.mxu0
    %243 = vdwg.mxu0
    %v244 = vadd.f32 %v229, %v241
    %v245 = vtanh.pop %v244
    %s246 = scalar_lea.vmem [#allocation2], 28
    %v247 = vld [vmem:[%s246] sm:$0xf]
    %v248 = vunpack.c.l.bf16 %v247
    %v249 = vpack.c.bf16 %v245, %v245
    %250 = vmatpush.bf16.msra.mxu0 %v108
    %251 = vmatpush.bf16.msra.mxu0 %v107
    %252 = vmatpush.bf16.msra.mxu0 %v106
    %253 = vmatpush.bf16.msra.mxu0 %v105
    %254 = vmatpush.bf16.msra.mxu0 %v104
    %255 = vmatpush.bf16.msra.mxu0 %v103
    %256 = vmatpush.bf16.msra.mxu0 %v102
    %257 = vmatpush.bf16.msra.mxu0 %v101
    %258 = vmatmul.bf16.gmra.mxu0 %v249
    %v259 = vpop.f32.mrf.mxu0
    %v260 = vadd.f32 0.0, %v259
    %v261 = vpop.f32.mrf.mxu0
    %262 = vdwg.mxu0
    %v263 = vadd.f32 %v248, %v260
    %v264 = vtanh.pop %v263
    %265 = vst [vmem:[#allocation7] sm:$0xff] %v264
    // Predicated region
    $region22: #{tpu_custom_call.1} parent=1 // pred_check
      _
    $region23: #{tpu_custom_call.1} parent=1 // pred_check_branch
      %267 = sbr.rel (0) target = $region25
    $region24: #{tpu_custom_call.1} parent=1 // pred_region
      %269 = vsyncadd [#allocation4], 0
      %s271 = sshll.u32 [#allocation7], 4
      %s272 = int_to_ptr.vmem [resolvable:$true] %s271
      %s273 = sshll.u32 %s2, 4
      %s274 = int_to_ptr.hbm [resolvable:$true] %s273
      %276 = dma.vmem_to_hbm [thread:$0]  %s272, 128, %s274, [#allocation4]
    $region25: #{tpu_custom_call.1} parent=1 // pred_fallthru
      _
    // Predicated region
    $region26: #{tpu_custom_call.1} parent=1 // pred_check
      _
    $region27: #{tpu_custom_call.1} parent=1 // pred_check_branch
      %278 = sbr.rel (0) target = $region29
    $region28: #{tpu_custom_call.1} parent=1 // pred_region
      %280 = dma.done [#allocation4], 128
    $region29: #{tpu_custom_call.1} parent=1 // pred_fallthru
      _
    %281 = vsyncpa [#allocation3], 1
    %282 = vsyncpa [#allocation6], 1
    %283 = vsyncpa [#allocation4], 1

// kernel: tpu_custom_call.1
$region0: #{tpu_custom_call.1}
  #allocation0 [shape = 'u32[]', space=smem, size = 0x4, offset = 0x4, fixed_abs, tag = 'smem constant byte address 0x4 - core index']
  #allocation1 [shape = 'u32[72,128]{1,0:T(1,128)}', space=vmem, size = 0x9000, scoped, tag = 'internal scratch']
  %s0 = inlined_call_operand.hbm [shape: bf16[8,8,128], index: 0, kind: input, shape index: {}]
  %s1 = inlined_call_operand.hbm [shape: bf16[128,128], index: 1, kind: input, shape index: {}]
  %s2 = inlined_call_operand.hbm [shape: f32[8,128], index: 2, kind: output, shape index: {}]
  %s3 = sld [smem:[#allocation0]]
  $region30: #{tpu_custom_call.1} parent=0
    _
  %s5 = ssub.s32 1, %s3
  %s6 = scalar_select 0, %s5, %s3
  $region1: #{tpu_custom_call.1} parent=0
    #allocation2 [shape = 'u8[16384]{0}', space=vmem, size = 0x4000, scoped, tag = 'input window, operand 0, single buffered']
    #allocation3 [shape = 's32[1]{0}', space=sflag, size = 0x4, scoped, tag = 'scoped memory for tpu_custom_call.1']
    #allocation4 [shape = 's32[1]{0}', space=sflag, size = 0x4, scoped, tag = 'scoped memory for tpu_custom_call.1']
    #allocation5 [shape = 'u8[32768]{0}', space=vmem, size = 0x8000, scoped, tag = 'input window, operand 1, single buffered']
    #allocation6 [shape = 's32[1]{0}', space=sflag, size = 0x4, scoped, tag = 'scoped memory for tpu_custom_call.1']
    #allocation7 [shape = 'u8[4096]{0}', space=vmem, size = 0x1000, scoped, tag = 'output window, operand 0, single buffered']
    %7 = vsyncpa [#allocation3], 0
    %8 = vsyncpa [#allocation6], 0
    %9 = vsyncpa [#allocation4], 0
    // Predicated region
    $region2: #{tpu_custom_call.1} parent=1 // pred_check
      _
    $region3: #{tpu_custom_call.1} parent=1 // pred_check_branch
      %11 = sbr.rel (0) target = $region5
    $region4: #{tpu_custom_call.1} parent=1 // pred_region
      %13 = vsyncadd [#allocation3], 0
      %s14 = sshll.u32 %s0, 4
      %s15 = int_to_ptr.hbm [resolvable:$true] %s14
      %s16 = sshll.u32 [#allocation2], 4
      %s17 = int_to_ptr.vmem [resolvable:$true] %s16
      %22 = dma.hbm_to_vmem [thread:$0]  %s15, 512, %s17, [#allocation3], 64, 64, 4
    $region5: #{tpu_custom_call.1} parent=1 // pred_fallthru
      _
    // Predicated region
    $region6: #{tpu_custom_call.1} parent=1 // pred_check
      _
    $region7: #{tpu_custom_call.1} parent=1 // pred_check_branch
      %24 = sbr.rel (0) target = $region9
    $region8: #{tpu_custom_call.1} parent=1 // pred_region
      %26 = vsyncadd [#allocation6], 0
      %s27 = sshll.u32 %s1, 4
      %s28 = int_to_ptr.hbm [resolvable:$true] %s27
      %s29 = sshll.u32 [#allocation5], 4
      %s30 = int_to_ptr.vmem [resolvable:$true] %s29
      %35 = dma.hbm_to_vmem [thread:$0]  %s28, 1024, %s30, [#allocation6], 64, 64, 4
    $region9: #{tpu_custom_call.1} parent=1 // pred_fallthru
      _
    // Predicated region
    $region10: #{tpu_custom_call.1} parent=1 // pred_check
      _
    $region11: #{tpu_custom_call.1} parent=1 // pred_check_branch
      %37 = sbr.rel (0) target = $region13
    $region12: #{tpu_custom_call.1} parent=1 // pred_region
      %39 = dma.done [#allocation3], 512
    $region13: #{tpu_custom_call.1} parent=1 // pred_fallthru
      _
    // Predicated region
    $region14: #{tpu_custom_call.1} parent=1 // pred_check
      _
    $region15: #{tpu_custom_call.1} parent=1 // pred_check_branch
      %41 = sbr.rel (0) target = $region17
    $region16: #{tpu_custom_call.1} parent=1 // pred_region
      %43 = dma.done [#allocation6], 1024
    $region17: #{tpu_custom_call.1} parent=1 // pred_fallthru
      _
    %p44 = scmp.eq.s32.totalorder 0, 0
    // Predicated region
    $region18: #{tpu_custom_call.1} parent=1 // pred_check
      %p45 = pneg %p44
    $region19: #{tpu_custom_call.1} parent=1 // pred_check_branch
      %47 = sbr.rel (%p45) target = $region21
    $region20: #{tpu_custom_call.1} parent=1 // pred_region
      %48 = vst [vmem:[#allocation7] sm:$0xff] 0.0
    $region21: #{tpu_custom_call.1} parent=1 // pred_fallthru
      _
    %v49 = vld [vmem:[#allocation7] sm:$0xff]
    %v50 = vld [vmem:[#allocation2] sm:$0xf]
    %v51 = vunpack.c.l.bf16 %v50
    %v52 = vpack.c.bf16 %v49, %v49
    %v53 = vld [vmem:[#allocation5] sm:$0xf]
    %v54 = vld [vmem:[#allocation5 + $0x4] sm:$0xf]
    %v55 = vld [vmem:[#allocation5 + $0x8] sm:$0xf]
    %v56 = vld [vmem:[#allocation5 + $0xc] sm:$0xf]
    %v57 = vld [vmem:[#allocation5 + $0x10] sm:$0xf]
    %v58 = vld [vmem:[#allocation5 + $0x14] sm:$0xf]
    %v59 = vld [vmem:[#allocation5 + $0x18] sm:$0xf]
    %v60 = vld [vmem:[#allocation5 + $0x1c] sm:$0xf]
    %v61 = vld [vmem:[#allocation5 + $0x20] sm:$0xf]
    %v62 = vld [vmem:[#allocation5 + $0x24] sm:$0xf]
    %v63 = vld [vmem:[#allocation5 + $0x28] sm:$0xf]
    %v64 = vld [vmem:[#allocation5 + $0x2c] sm:$0xf]
    %v65 = vld [vmem:[#allocation5 + $0x30] sm:$0xf]
    %v66 = vld [vmem:[#allocation5 + $0x34] sm:$0xf]
    %v67 = vld [vmem:[#allocation5 + $0x38] sm:$0xf]
    %v68 = vld [vmem:[#allocation5 + $0x3c] sm:$0xf]
    %v85 = vunpack.c.l.b16 %v53
    %v86 = vunpack.c.l.b16 %v54
    %v87 = vunpack.c.l.b16 %v55
    %v88 = vunpack.c.l.b16 %v56
    %v89 = vunpack.c.l.b16 %v57
    %v90 = vunpack.c.l.b16 %v58
    %v91 = vunpack.c.l.b16 %v59
    %v92 = vunpack.c.l.b16 %v60
    %v93 = vunpack.c.l.b16 %v61
    %v94 = vunpack.c.l.b16 %v62
    %v95 = vunpack.c.l.b16 %v63
    %v96 = vunpack.c.l.b16 %v64
    %v97 = vunpack.c.l.b16 %v65
    %v98 = vunpack.c.l.b16 %v66
    %v99 = vunpack.c.l.b16 %v67
    %v100 = vunpack.c.l.b16 %v68
    %v101 = vpack.c.b16 %v86, %v85
    %v102 = vpack.c.b16 %v88, %v87
    %v103 = vpack.c.b16 %v90, %v89
    %v104 = vpack.c.b16 %v92, %v91
    %v105 = vpack.c.b16 %v94, %v93
    %v106 = vpack.c.b16 %v96, %v95
    %v107 = vpack.c.b16 %v98, %v97
    %v108 = vpack.c.b16 %v100, %v99
    %117 = vmatpush.bf16.msra.mxu0 %v108
    %118 = vmatpush.bf16.msra.mxu0 %v107
    %119 = vmatpush.bf16.msra.mxu0 %v106
    %120 = vmatpush.bf16.msra.mxu0 %v105
    %121 = vmatpush.bf16.msra.mxu0 %v104
    %122 = vmatpush.bf16.msra.mxu0 %v103
    %123 = vmatpush.bf16.msra.mxu0 %v102
    %124 = vmatpush.bf16.msra.mxu0 %v101
    %125 = vmatmul.bf16.gmra.mxu0 %v52
    %v126 = vpop.f32.mrf.mxu0
    %v127 = vadd.f32 0.0, %v126
    %v128 = vpop.f32.mrf.mxu0
    %129 = vdwg.mxu0
    %v130 = vadd.f32 %v51, %v127
    %v131 = vtanh.pop %v130
    %s132 = scalar_lea.vmem [#allocation2], 4
    %v133 = vld [vmem:[%s132] sm:$0xf]
    %v134 = vunpack.c.l.bf16 %v133
    %v135 = vpack.c.bf16 %v131, %v131
    %136 = vmatpush.bf16.msra.mxu0 %v108
    %137 = vmatpush.bf16.msra.mxu0 %v107
    %138 = vmatpush.bf16.msra.mxu0 %v106
    %139 = vmatpush.bf16.msra.mxu0 %v105
    %140 = vmatpush.bf16.msra.mxu0 %v104
    %141 = vmatpush.bf16.msra.mxu0 %v103
    %142 = vmatpush.bf16.msra.mxu0 %v102
    %143 = vmatpush.bf16.msra.mxu0 %v101
    %144 = vmatmul.bf16.gmra.mxu0 %v135
    %v145 = vpop.f32.mrf.mxu0
    %v146 = vadd.f32 0.0, %v145
    %v147 = vpop.f32.mrf.mxu0
    %148 = vdwg.mxu0
    %v149 = vadd.f32 %v134, %v146
    %v150 = vtanh.pop %v149
    %s151 = scalar_lea.vmem [#allocation2], 8
    %v152 = vld [vmem:[%s151] sm:$0xf]
    %v153 = vunpack.c.l.bf16 %v152
    %v154 = vpack.c.bf16 %v150, %v150
    %155 = vmatpush.bf16.msra.mxu0 %v108
    %156 = vmatpush.bf16.msra.mxu0 %v107
    %157 = vmatpush.bf16.msra.mxu0 %v106
    %158 = vmatpush.bf16.msra.mxu0 %v105
    %159 = vmatpush.bf16.msra.mxu0 %v104
    %160 = vmatpush.bf16.msra.mxu0 %v103
    %161 = vmatpush.bf16.msra.mxu0 %v102
    %162 = vmatpush.bf16.msra.mxu0 %v101
    %163 = vmatmul.bf16.gmra.mxu0 %v154
    %v164 = vpop.f32.mrf.mxu0
    %v165 = vadd.f32 0.0, %v164
    %v166 = vpop.f32.mrf.mxu0
    %167 = vdwg.mxu0
    %v168 = vadd.f32 %v153, %v165
    %v169 = vtanh.pop %v168
    %s170 = scalar_lea.vmem [#allocation2], 12
    %v171 = vld [vmem:[%s170] sm:$0xf]
    %v172 = vunpack.c.l.bf16 %v171
    %v173 = vpack.c.bf16 %v169, %v169
    %174 = vmatpush.bf16.msra.mxu0 %v108
    %175 = vmatpush.bf16.msra.mxu0 %v107
    %176 = vmatpush.bf16.msra.mxu0 %v106
    %177 = vmatpush.bf16.msra.mxu0 %v105
    %178 = vmatpush.bf16.msra.mxu0 %v104
    %179 = vmatpush.bf16.msra.mxu0 %v103
    %180 = vmatpush.bf16.msra.mxu0 %v102
    %181 = vmatpush.bf16.msra.mxu0 %v101
    %182 = vmatmul.bf16.gmra.mxu0 %v173
    %v183 = vpop.f32.mrf.mxu0
    %v184 = vadd.f32 0.0, %v183
    %v185 = vpop.f32.mrf.mxu0
    %186 = vdwg.mxu0
    %v187 = vadd.f32 %v172, %v184
    %v188 = vtanh.pop %v187
    %s189 = scalar_lea.vmem [#allocation2], 16
    %v190 = vld [vmem:[%s189] sm:$0xf]
    %v191 = vunpack.c.l.bf16 %v190
    %v192 = vpack.c.bf16 %v188, %v188
    %193 = vmatpush.bf16.msra.mxu0 %v108
    %194 = vmatpush.bf16.msra.mxu0 %v107
    %195 = vmatpush.bf16.msra.mxu0 %v106
    %196 = vmatpush.bf16.msra.mxu0 %v105
    %197 = vmatpush.bf16.msra.mxu0 %v104
    %198 = vmatpush.bf16.msra.mxu0 %v103
    %199 = vmatpush.bf16.msra.mxu0 %v102
    %200 = vmatpush.bf16.msra.mxu0 %v101
    %201 = vmatmul.bf16.gmra.mxu0 %v192
    %v202 = vpop.f32.mrf.mxu0
    %v203 = vadd.f32 0.0, %v202
    %v204 = vpop.f32.mrf.mxu0
    %205 = vdwg.mxu0
    %v206 = vadd.f32 %v191, %v203
    %v207 = vtanh.pop %v206
    %s208 = scalar_lea.vmem [#allocation2], 20
    %v209 = vld [vmem:[%s208] sm:$0xf]
    %v210 = vunpack.c.l.bf16 %v209
    %v211 = vpack.c.bf16 %v207, %v207
    %212 = vmatpush.bf16.msra.mxu0 %v108
    %213 = vmatpush.bf16.msra.mxu0 %v107
    %214 = vmatpush.bf16.msra.mxu0 %v106
    %215 = vmatpush.bf16.msra.mxu0 %v105
    %216 = vmatpush.bf16.msra.mxu0 %v104
    %217 = vmatpush.bf16.msra.mxu0 %v103
    %218 = vmatpush.bf16.msra.mxu0 %v102
    %219 = vmatpush.bf16.msra.mxu0 %v101
    %220 = vmatmul.bf16.gmra.mxu0 %v211
    %v221 = vpop.f32.mrf.mxu0
    %v222 = vadd.f32 0.0, %v221
    %v223 = vpop.f32.mrf.mxu0
    %224 = vdwg.mxu0
    %v225 = vadd.f32 %v210, %v222
    %v226 = vtanh.pop %v225
    %s227 = scalar_lea.vmem [#allocation2], 24
    %v228 = vld [vmem:[%s227] sm:$0xf]
    %v229 = vunpack.c.l.bf16 %v228
    %v230 = vpack.c.bf16 %v226, %v226
    %231 = vmatpush.bf16.msra.mxu0 %v108
    %232 = vmatpush.bf16.msra.mxu0 %v107
    %233 = vmatpush.bf16.msra.mxu0 %v106
    %234 = vmatpush.bf16.msra.mxu0 %v105
    %235 = vmatpush.bf16.msra.mxu0 %v104
    %236 = vmatpush.bf16.msra.mxu0 %v103
    %237 = vmatpush.bf16.msra.mxu0 %v102
    %238 = vmatpush.bf16.msra.mxu0 %v101
    %239 = vmatmul.bf16.gmra.mxu0 %v230
    %v240 = vpop.f32.mrf.mxu0
    %v241 = vadd.f32 0.0, %v240
    %v242 = vpop.f32.mrf.mxu0
    %243 = vdwg.mxu0
    %v244 = vadd.f32 %v229, %v241
    %v245 = vtanh.pop %v244
    %s246 = scalar_lea.vmem [#allocation2], 28
    %v247 = vld [vmem:[%s246] sm:$0xf]
    %v248 = vunpack.c.l.bf16 %v247
    %v249 = vpack.c.bf16 %v245, %v245
    %250 = vmatpush.bf16.msra.mxu0 %v108
    %251 = vmatpush.bf16.msra.mxu0 %v107
    %252 = vmatpush.bf16.msra.mxu0 %v106
    %253 = vmatpush.bf16.msra.mxu0 %v105
    %254 = vmatpush.bf16.msra.mxu0 %v104
    %255 = vmatpush.bf16.msra.mxu0 %v103
    %256 = vmatpush.bf16.msra.mxu0 %v102
    %257 = vmatpush.bf16.msra.mxu0 %v101
    %258 = vmatmul.bf16.gmra.mxu0 %v249
    %v259 = vpop.f32.mrf.mxu0
    %v260 = vadd.f32 0.0, %v259
    %v261 = vpop.f32.mrf.mxu0
    %262 = vdwg.mxu0
    %v263 = vadd.f32 %v248, %v260
    %v264 = vtanh.pop %v263
    %265 = vst [vmem:[#allocation7] sm:$0xff] %v264
    // Predicated region
    $region22: #{tpu_custom_call.1} parent=1 // pred_check
      _
    $region23: #{tpu_custom_call.1} parent=1 // pred_check_branch
      %267 = sbr.rel (0) target = $region25
    $region24: #{tpu_custom_call.1} parent=1 // pred_region
      %269 = vsyncadd [#allocation4], 0
      %s271 = sshll.u32 [#allocation7], 4
      %s272 = int_to_ptr.vmem [resolvable:$true] %s271
      %s273 = sshll.u32 %s2, 4
      %s274 = int_to_ptr.hbm [resolvable:$true] %s273
      %276 = dma.vmem_to_hbm [thread:$0]  %s272, 128, %s274, [#allocation4]
    $region25: #{tpu_custom_call.1} parent=1 // pred_fallthru
      _
    // Predicated region
    $region26: #{tpu_custom_call.1} parent=1 // pred_check
      _
    $region27: #{tpu_custom_call.1} parent=1 // pred_check_branch
      %278 = sbr.rel (0) target = $region29
    $region28: #{tpu_custom_call.1} parent=1 // pred_region
      %280 = dma.done [#allocation4], 128
    $region29: #{tpu_custom_call.1} parent=1 // pred_fallthru
      _
    %281 = vsyncpa [#allocation3], 1
    %282 = vsyncpa [#allocation6], 1
    %283 = vsyncpa [#allocation4], 1

</llo_original>
